<compile_context>
chip_gen: v6e
topology: v6e:2x2x1
jax: 0.10.0
libtpu: 0.0.40
codegen_flags: <defaults>
</compile_context>

<pallas_src>
import numpy as np
import jax
import jax.numpy as jnp
from jax.experimental import pallas as pl
from jax.experimental.pallas import tpu as pltpu

_EPS = 1e-5
_LEAKY_SLOPE = 0.2


# ------------------------------- kernel -------------------------------------

def _convblock_kernel(xs_ref, w_ref, shift_ref, o_ref, pat_ref):
    """Fused 4x4/stride-2/pad-1 conv (as im2col matmul) + folded BN + LeakyReLU(0.2).

    xs_ref   : (1, Ho+1, Wo+1, 4*Cin) space-to-depth padded input (one image)
    w_ref    : (16*Cin, Cout)         im2col weight with BN scale pre-folded
    shift_ref: (1, Cout)              BN shift = beta - mean * scale
    o_ref    : (1, Ho*Wo, Cout)       output block
    pat_ref  : (Ho*Wo, 16*Cin)        VMEM scratch for the im2col patch matrix
    """
    _, hp, wp, c4 = xs_ref.shape
    ho, wo = hp - 1, wp - 1
    cout = o_ref.shape[-1]

    # im2col into VMEM scratch: a 2x2 window over the space-to-depth grid covers all
    # 16 taps of the 4x4/stride-2 conv -> only contiguous slices, built once.
    for t, (by, bx) in enumerate(((0, 0), (0, 1), (1, 0), (1, 1))):
        slab = xs_ref[:, by:by + ho, bx:bx + wo, :]          # (1, Ho, Wo, 4*Cin)
        pat_ref[:, t * c4:(t + 1) * c4] = slab.reshape(ho * wo, c4)

    # Single MXU pass: bf16 operands, f32 accumulation (no HIGHEST-precision emulation).
    acc = jnp.dot(pat_ref[...].astype(jnp.bfloat16),
                  w_ref[...].astype(jnp.bfloat16),
                  preferred_element_type=jnp.float32)        # (Ho*Wo, Cout)

    y = acc + shift_ref[...]                                 # folded BN (scale already in w)
    y = jnp.where(y > 0, y, _LEAKY_SLOPE * y)                # LeakyReLU(0.2)
    o_ref[...] = y.reshape(1, ho * wo, cout)


# ------------------------------ wrapper --------------------------------------

def _bn_fold(gamma, beta, mean, var, eps=_EPS):
    scale = gamma / jnp.sqrt(var + eps)
    shift = beta - mean * scale
    return scale, shift


def conv_block_forward(x_nchw, params):
    """ConvBlock.forward: LeakyReLU(0.2)(BN(Conv2d(k=4, s=2, p=1, bias=False)(x)))."""
    w = params['conv_w']                                     # (Cout, Cin, 4, 4) OIHW
    n, cin, h, wdt = x_nchw.shape
    cout = w.shape[0]
    assert h % 2 == 0 and wdt % 2 == 0, "stride-2 conv expects even spatial dims"
    ho, wo = h // 2, wdt // 2

    scale, shift = _bn_fold(params['bn_g'], params['bn_b'],
                            params['bn_m'], params['bn_v'])

    # ---- layout plumbing (tiny arrays; XLA fuses pad+reshape+transpose into one op) ----
    # pad=1 then space-to-depth(2): conv(k=4,s=2) over (H+2,W+2,Cin) becomes a dense 2x2
    # window over an (Ho+1, Wo+1, 4*Cin) grid.
    xp = jnp.pad(x_nchw, ((0, 0), (0, 0), (1, 1), (1, 1)))              # (N, Cin, H+2, W+2)
    xs = xp.reshape(n, cin, ho + 1, 2, wo + 1, 2)                       # (n, c, I, py, J, px)
    xs = xs.transpose(0, 2, 4, 3, 5, 1).reshape(n, ho + 1, wo + 1, 4 * cin)

    # ---- weight: OIHW -> im2col rows ordered (by, bx, py, px, c); BN scale folded -------
    wr = w.reshape(cout, cin, 2, 2, 2, 2)                               # (o, c, by, py, bx, px)
    wmat = wr.transpose(2, 4, 3, 5, 1, 0).reshape(16 * cin, cout)       # (16*Cin, Cout)
    wmat = (wmat * scale[None, :]).astype(jnp.float32)
    shift2d = shift.reshape(1, cout).astype(jnp.float32)

    out2d = pl.pallas_call(
        _convblock_kernel,
        out_shape=jax.ShapeDtypeStruct((n, ho * wo, cout), jnp.float32),
        grid=(n,),
        in_specs=[
            pl.BlockSpec((1, ho + 1, wo + 1, 4 * cin), lambda i: (i, 0, 0, 0)),
            pl.BlockSpec((16 * cin, cout), lambda i: (0, 0)),
            pl.BlockSpec((1, cout), lambda i: (0, 0)),
        ],
        out_specs=pl.BlockSpec((1, ho * wo, cout), lambda i: (i, 0, 0)),
        scratch_shapes=[pltpu.VMEM((ho * wo, 16 * cin), jnp.float32)],
        compiler_params=pltpu.CompilerParams(
            dimension_semantics=("parallel",)),     # batch shards across TCs on v7x
    )(xs, wmat, shift2d)

    return out2d.reshape(n, ho, wo, cout).transpose(0, 3, 1, 2)         # NHWC -> NCHW


# --------------------------- reference (pure JAX) -----------------------------

def reference_forward(x_nchw, params, *, bf16_match=False):
    w = params['conv_w']
    scale, shift = _bn_fold(params['bn_g'], params['bn_b'],
                            params['bn_m'], params['bn_v'])
    if bf16_match:
        # mirror the kernel's single-pass bf16 MXU rounding exactly
        x_in = x_nchw.astype(jnp.bfloat16).astype(jnp.float32)
        w_in = (w * scale[:, None, None, None]).astype(jnp.bfloat16).astype(jnp.float32)
        post_scale = jnp.ones_like(scale)
    else:
        x_in, w_in, post_scale = x_nchw, w, scale
    y = jax.lax.conv_general_dilated(
        x_in, w_in, window_strides=(2, 2), padding=[(1, 1), (1, 1)],
        dimension_numbers=('NCHW', 'OIHW', 'NCHW'),
        precision=jax.lax.Precision.HIGHEST)
    y = y * post_scale[None, :, None, None] + shift[None, :, None, None]
    return jnp.where(y > 0, y, _LEAKY_SLOPE * y)


# ------------------------------ params init -----------------------------------

def init_params(key, fin, fout):
    ks = jax.random.split(key, 5)
    return {
        'conv_w': (0.1 * jax.random.normal(ks[0], (fout, fin, 4, 4))).astype(jnp.float32),
        'bn_g': jax.random.uniform(ks[1], (fout,), minval=0.5, maxval=1.5).astype(jnp.float32),
        'bn_b': (0.1 * jax.random.normal(ks[2], (fout,))).astype(jnp.float32),
        'bn_m': (0.1 * jax.random.normal(ks[3], (fout,))).astype(jnp.float32),
        'bn_v': jax.random.uniform(ks[4], (fout,), minval=0.5, maxval=1.5).astype(jnp.float32),
    }


if __name__ == "__main__":
    key = jax.random.PRNGKey(0)
    kx, kp = jax.random.split(key)
    N, fin, fout, H, W = 2, 4, 8, 16, 16

    x = jax.random.normal(kx, (N, fin, H, W), dtype=jnp.float32)   # NCHW like PyTorch
    params = init_params(kp, fin, fout)

    fwd = jax.jit(lambda xin: conv_block_forward(xin, params))
    out = jax.block_until_ready(fwd(x))
    assert out.shape == (N, fout, H // 2, W // 2), out.shape

    # Tight check: reference with bf16-rounded operands matches the kernel's MXU math.
    ref_tight = reference_forward(x, params, bf16_match=True)
    np.testing.assert_allclose(np.asarray(out), np.asarray(ref_tight), rtol=1e-3, atol=1e-4)

    # Loose check vs the full-f32 module semantics (bf16 single-pass MXU tolerance).
    ref_f32 = reference_forward(x, params, bf16_match=False)
    np.testing.assert_allclose(np.asarray(out), np.asarray(ref_f32), rtol=3e-2, atol=3e-2)

    print("KERNEL_OK")
</pallas_src>

<mosaic_0001>
module attributes {stable_mosaic.version = 11 : i64} {
  func.func @_convblock_kernel(%arg0: i32, %arg1: memref<1x9x9x16xf32, #tpu.memory_space<vmem>>, %arg2: memref<64x8xf32, #tpu.memory_space<vmem>>, %arg3: memref<1x8xf32, #tpu.memory_space<vmem>>, %arg4: memref<1x64x8xf32, #tpu.memory_space<vmem>>, %arg5: memref<64x64xf32, #tpu.memory_space<vmem>>) attributes {dimension_semantics = [#tpu.dimension_semantics<parallel>], iteration_bounds = array<i64: 2>, scalar_prefetch = 0 : i64, scratch_operands = 1 : i64, tpu.core_type = #tpu.core_type<tc>, window_params = [{transform_indices = @transform_0, window_bounds = array<i64: 1, 9, 9, 16>}, {pipeline_mode = #tpu.pipeline_mode<synchronous>, transform_indices = @transform_1, window_bounds = array<i64: 64, 8>}, {pipeline_mode = #tpu.pipeline_mode<synchronous>, transform_indices = @transform_2, window_bounds = array<i64: 1, 8>}, {transform_indices = @transform_3, window_bounds = array<i64: 1, 64, 8>}]} {
    %c0 = arith.constant 0 : index
    %c0_0 = arith.constant 0 : index
    %c0_1 = arith.constant 0 : index
    %c0_2 = arith.constant 0 : index
    %0 = vector.load %arg1[%c0, %c0_0, %c0_1, %c0_2] : memref<1x9x9x16xf32, #tpu.memory_space<vmem>>, vector<1x8x8x16xf32>
    %1 = vector.shape_cast %0 : vector<1x8x8x16xf32> to vector<64x16xf32>
    %c0_3 = arith.constant 0 : index
    %c0_4 = arith.constant 0 : index
    %2 = vector.load %arg5[%c0_3, %c0_4] : memref<64x64xf32, #tpu.memory_space<vmem>>, vector<64x16xf32>
    tpu.vector_store %arg5[%c0_3, %c0_4], %1 {strides = array<i32>} : memref<64x64xf32, #tpu.memory_space<vmem>>, vector<64x16xf32>,
    %c0_5 = arith.constant 0 : index
    %c0_6 = arith.constant 0 : index
    %c1 = arith.constant 1 : index
    %c0_7 = arith.constant 0 : index
    %3 = vector.load %arg1[%c0_5, %c0_6, %c1, %c0_7] : memref<1x9x9x16xf32, #tpu.memory_space<vmem>>, vector<1x8x8x16xf32>
    %4 = vector.shape_cast %3 : vector<1x8x8x16xf32> to vector<64x16xf32>
    %c0_8 = arith.constant 0 : index
    %c16 = arith.constant 16 : index
    %5 = vector.load %arg5[%c0_8, %c16] : memref<64x64xf32, #tpu.memory_space<vmem>>, vector<64x16xf32>
    tpu.vector_store %arg5[%c0_8, %c16], %4 {strides = array<i32>} : memref<64x64xf32, #tpu.memory_space<vmem>>, vector<64x16xf32>,
    %c0_9 = arith.constant 0 : index
    %c1_10 = arith.constant 1 : index
    %c0_11 = arith.constant 0 : index
    %c0_12 = arith.constant 0 : index
    %6 = vector.load %arg1[%c0_9, %c1_10, %c0_11, %c0_12] : memref<1x9x9x16xf32, #tpu.memory_space<vmem>>, vector<1x8x8x16xf32>
    %7 = vector.shape_cast %6 : vector<1x8x8x16xf32> to vector<64x16xf32>
    %c0_13 = arith.constant 0 : index
    %c32 = arith.constant 32 : index
    %8 = vector.load %arg5[%c0_13, %c32] : memref<64x64xf32, #tpu.memory_space<vmem>>, vector<64x16xf32>
    tpu.vector_store %arg5[%c0_13, %c32], %7 {strides = array<i32>} : memref<64x64xf32, #tpu.memory_space<vmem>>, vector<64x16xf32>,
    %c0_14 = arith.constant 0 : index
    %c1_15 = arith.constant 1 : index
    %c1_16 = arith.constant 1 : index
    %c0_17 = arith.constant 0 : index
    %9 = vector.load %arg1[%c0_14, %c1_15, %c1_16, %c0_17] : memref<1x9x9x16xf32, #tpu.memory_space<vmem>>, vector<1x8x8x16xf32>
    %10 = vector.shape_cast %9 : vector<1x8x8x16xf32> to vector<64x16xf32>
    %c0_18 = arith.constant 0 : index
    %c48 = arith.constant 48 : index
    %11 = vector.load %arg5[%c0_18, %c48] : memref<64x64xf32, #tpu.memory_space<vmem>>, vector<64x16xf32>
    tpu.vector_store %arg5[%c0_18, %c48], %10 {strides = array<i32>} : memref<64x64xf32, #tpu.memory_space<vmem>>, vector<64x16xf32>,
    %c0_19 = arith.constant 0 : index
    %c0_20 = arith.constant 0 : index
    %12 = vector.load %arg5[%c0_19, %c0_20] : memref<64x64xf32, #tpu.memory_space<vmem>>, vector<64x64xf32>
    %13 = arith.truncf %12 : vector<64x64xf32> to vector<64x64xbf16>
    %c0_21 = arith.constant 0 : index
    %c0_22 = arith.constant 0 : index
    %14 = vector.load %arg2[%c0_21, %c0_22] : memref<64x8xf32, #tpu.memory_space<vmem>>, vector<64x8xf32>
    %15 = arith.truncf %14 : vector<64x8xf32> to vector<64x8xbf16>
    %cst = arith.constant dense<0.000000e+00> : vector<64x8xf32>
    %16 = tpu.matmul %13, %15, %cst {dimension_numbers = #tpu.dot_dimension_numbers<[1], [0], [0], [1], [0, 0, 1, 1], [], []>} : vector<64x64xbf16>, vector<64x8xbf16>, vector<64x8xf32> -> vector<64x8xf32>
    %c0_23 = arith.constant 0 : index
    %c0_24 = arith.constant 0 : index
    %17 = vector.load %arg3[%c0_23, %c0_24] : memref<1x8xf32, #tpu.memory_space<vmem>>, vector<1x8xf32>
    %18 = vector.broadcast %17 : vector<1x8xf32> to vector<64x8xf32>
    %19 = arith.addf %16, %18 : vector<64x8xf32>
    %cst_25 = arith.constant 0.000000e+00 : f32
    %20 = vector.broadcast %cst_25 : f32 to vector<64x8xf32>
    %21 = arith.cmpf ogt, %19, %20 : vector<64x8xf32>
    %cst_26 = arith.constant 2.000000e-01 : f32
    %22 = vector.broadcast %cst_26 : f32 to vector<64x8xf32>
    %23 = arith.mulf %22, %19 : vector<64x8xf32>
    %24 = arith.select %21, %19, %23 : vector<64x8xi1>, vector<64x8xf32>
    %25 = vector.shape_cast %24 : vector<64x8xf32> to vector<1x64x8xf32>
    %c0_27 = arith.constant 0 : index
    %c0_28 = arith.constant 0 : index
    %c0_29 = arith.constant 0 : index
    %26 = vector.load %arg4[%c0_27, %c0_28, %c0_29] : memref<1x64x8xf32, #tpu.memory_space<vmem>>, vector<1x64x8xf32>
    tpu.vector_store %arg4[%c0_27, %c0_28, %c0_29], %25 {strides = array<i32>} : memref<1x64x8xf32, #tpu.memory_space<vmem>>, vector<1x64x8xf32>,
    return
  }
  func.func @transform_0(%arg0: i32) -> (i32, i32, i32, i32) {
    %c0_i32 = arith.constant 0 : i32
    %c0_i32_0 = arith.constant 0 : i32
    %c0_i32_1 = arith.constant 0 : i32
    %c0_i32_2 = arith.constant 0 : i32
    return %arg0, %c0_i32, %c0_i32_0, %c0_i32_1 : i32, i32, i32, i32
  }
  func.func @transform_1(%arg0: i32) -> (i32, i32) {
    %c0_i32 = arith.constant 0 : i32
    %c0_i32_0 = arith.constant 0 : i32
    %c0_i32_1 = arith.constant 0 : i32
    return %c0_i32, %c0_i32_0 : i32, i32
  }
  func.func @transform_2(%arg0: i32) -> (i32, i32) {
    %c0_i32 = arith.constant 0 : i32
    %c0_i32_0 = arith.constant 0 : i32
    %c0_i32_1 = arith.constant 0 : i32
    return %c0_i32, %c0_i32_0 : i32, i32
  }
  func.func @transform_3(%arg0: i32) -> (i32, i32, i32) {
    %c0_i32 = arith.constant 0 : i32
    %c0_i32_0 = arith.constant 0 : i32
    %c0_i32_1 = arith.constant 0 : i32
    return %arg0, %c0_i32, %c0_i32_0 : i32, i32, i32
  }
}

</mosaic_0001>

<llo_original>
// kernel: _lambda_.1
$region0: #{_lambda_.1}
  #allocation0 [shape = 'u32[]', space=smem, size = 0x4, offset = 0x4, fixed_abs, tag = 'smem constant byte address 0x4 - core index']
  #allocation1 [shape = 'u32[144,128]{1,0:T(1,128)}', space=vmem, size = 0x12000, scoped, tag = 'internal scratch']
  #allocation2 [shape = 'f32[64,64]{1,0:T(8,128)}', space=vmem, size = 0x8000, scoped, tag = 'scratch operand']
  %s0 = inlined_call_operand.vmem [shape: f32[2,9,9,16], index: 0, kind: input, shape index: {}]
  %s1 = inlined_call_operand.vmem [shape: f32[64,8], index: 1, kind: input, shape index: {}]
  %s2 = inlined_call_operand.vmem [shape: f32[1,8], index: 2, kind: input, shape index: {}]
  %s3 = inlined_call_operand.vmem [shape: f32[2,64,8], index: 3, kind: output, shape index: {}]
  %s4 = sld [smem:[#allocation0]]
  $region45: #{_lambda_.1} parent=0
    _
  %s6 = ssub.s32 1, %s4
  %s7 = scalar_select 0, %s6, %s4
  loop: start=0, step=1, limit=4
  $region2: #{_lambda_.1} parent=0 // loop_pre_header
    _
  $region3: #{_lambda_.1} parent=0 // loop_header
    %s9 = sphi 0, %s13
    %p10 = scmp.ge.s32.totalorder %s9, 4
    %s19 = sphi 0, %s21
    %s22 = sphi 0, %s19
    %s23 = sphi 0, %s22
    %s39 = sphi 0, %s23
    %s43 = sphi 0, %s43
    %s45 = sphi 0, %s43
    %s46 = sphi 0, %s45
    %s60 = sphi 0, %s46
    %s64 = sphi 0, %s64
    %s66 = sphi 0, %s64
    %s67 = sphi 0, %s66
    %s81 = sphi 0, %s67
    %s87 = sphi 0, %s89
    %s90 = sphi 0, %s87
    %s91 = sphi 0, %s90
    %s107 = sphi 0, %s91
  $region4: #{_lambda_.1} parent=0 // loop_header_branch
    %12 = sbr.rel (%p10) target = $region8
  $region5: #{_lambda_.1} parent=0 // loop_body
    %s14 = ssub.s32 %s9, 1
    %s15 = ssub.s32 %s9, 2
    %s16 = sadd.s32 %s9, 1
    %s17 = ssub.s32 %s9, %s16
    %p18 = scmp.eq.s32.totalorder %s17, 0
    %s20 = sadd.s32 %s19, 1
    %s21 = scalar_select %p18, %s19, %s20
    %p24 = pneg %p18
    %p25 = scmp.eq.s32.totalorder %s9, 1
    %p26 = por %p24, %p25
    %p27 = scmp.ne.s32.totalorder %s19, %s22
    %p28 = scmp.eq.s32.totalorder %s9, 0
    %p29 = por %p27, %p28
    %p30 = scmp.ne.s32.totalorder %s19, %s22
    %p31 = scmp.eq.s32.totalorder %s14, 1
    %p32 = por %p30, %p31
    %p33 = scmp.ne.s32.totalorder %s22, %s23
    %p34 = scmp.eq.s32.totalorder %s14, 0
    %p35 = por %p33, %p34
    %p36 = scmp.ne.s32.totalorder %s22, %s23
    %p37 = scmp.eq.s32.totalorder %s15, 1
    %p38 = por %p36, %p37
    %p40 = scmp.ne.s32.totalorder %s23, %s39
    %p41 = scmp.eq.s32.totalorder %s15, 0
    %p42 = por %p40, %p41
    %s44 = sadd.s32 %s43, 1
    %p47 = scmp.eq.s32.totalorder %s9, 1
    %p48 = scmp.ne.s32.totalorder %s43, %s45
    %p49 = scmp.eq.s32.totalorder %s9, 0
    %p50 = por %p48, %p49
    %p51 = scmp.ne.s32.totalorder %s43, %s45
    %p52 = scmp.eq.s32.totalorder %s14, 1
    %p53 = por %p51, %p52
    %p54 = scmp.ne.s32.totalorder %s45, %s46
    %p55 = scmp.eq.s32.totalorder %s14, 0
    %p56 = por %p54, %p55
    %p57 = scmp.ne.s32.totalorder %s45, %s46
    %p58 = scmp.eq.s32.totalorder %s15, 1
    %p59 = por %p57, %p58
    %p61 = scmp.ne.s32.totalorder %s46, %s60
    %p62 = scmp.eq.s32.totalorder %s15, 0
    %p63 = por %p61, %p62
    %s65 = sadd.s32 %s64, 1
    %p68 = scmp.eq.s32.totalorder %s9, 1
    %p69 = scmp.ne.s32.totalorder %s64, %s66
    %p70 = scmp.eq.s32.totalorder %s9, 0
    %p71 = por %p69, %p70
    %p72 = scmp.ne.s32.totalorder %s64, %s66
    %p73 = scmp.eq.s32.totalorder %s14, 1
    %p74 = por %p72, %p73
    %p75 = scmp.ne.s32.totalorder %s66, %s67
    %p76 = scmp.eq.s32.totalorder %s14, 0
    %p77 = por %p75, %p76
    %p78 = scmp.ne.s32.totalorder %s66, %s67
    %p79 = scmp.eq.s32.totalorder %s15, 1
    %p80 = por %p78, %p79
    %p82 = scmp.ne.s32.totalorder %s67, %s81
    %p83 = scmp.eq.s32.totalorder %s15, 0
    %p84 = por %p82, %p83
    %s85 = ssub.s32 %s9, %s16
    %p86 = scmp.eq.s32.totalorder %s85, 0
    %s88 = sadd.s32 %s87, 1
    %s89 = scalar_select %p86, %s87, %s88
    %p92 = pneg %p86
    %p93 = scmp.eq.s32.totalorder %s9, 1
    %p94 = por %p92, %p93
    %p95 = scmp.ne.s32.totalorder %s87, %s90
    %p96 = scmp.eq.s32.totalorder %s9, 0
    %p97 = por %p95, %p96
    %p98 = scmp.ne.s32.totalorder %s87, %s90
    %p99 = scmp.eq.s32.totalorder %s14, 1
    %p100 = por %p98, %p99
    %p101 = scmp.ne.s32.totalorder %s90, %s91
    %p102 = scmp.eq.s32.totalorder %s14, 0
    %p103 = por %p101, %p102
    %p104 = scmp.ne.s32.totalorder %s90, %s91
    %p105 = scmp.eq.s32.totalorder %s15, 1
    %p106 = por %p104, %p105
    %p108 = scmp.ne.s32.totalorder %s91, %s107
    %p109 = scmp.eq.s32.totalorder %s15, 0
    %p110 = por %p108, %p109
    %p111 = scmp.le.s32.totalorder 1, %s9
    %p112 = scmp.lt.s32.totalorder %s9, 3
    %p113 = pnand %p111, %p112
    %p114 = pneg %p113
    // Predicated region
    $region9: #{_lambda_.1} parent=5 // pred_check
      _
    $region10: #{_lambda_.1} parent=5 // pred_check_branch
      %116 = sbr.rel (%p113) target = $region12
    $region11: #{_lambda_.1} parent=5 // pred_region
      %s117 = ssub.s32 %s9, 1
      // Predicated region
      $region13: #{_lambda_.1} parent=11 // pred_check
        %p118 = pneg %p56
      $region14: #{_lambda_.1} parent=11 // pred_check_branch
        %120 = sbr.rel (%p118) target = $region16
      $region15: #{_lambda_.1} parent=11 // pred_region
        _
      $region16: #{_lambda_.1} parent=11 // pred_fallthru
        _
      // Predicated region
      $region17: #{_lambda_.1} parent=11 // pred_check
        %p121 = pneg %p77
      $region18: #{_lambda_.1} parent=11 // pred_check_branch
        %123 = sbr.rel (%p121) target = $region20
      $region19: #{_lambda_.1} parent=11 // pred_region
        _
      $region20: #{_lambda_.1} parent=11 // pred_fallthru
        _
    $region12: #{_lambda_.1} parent=5 // pred_fallthru
      _
    %p124 = scmp.lt.s32.totalorder %s9, 2
    // Predicated region
    $region21: #{_lambda_.1} parent=5 // pred_check
      %p125 = pneg %p124
    $region22: #{_lambda_.1} parent=5 // pred_check_branch
      %127 = sbr.rel (%p125) target = $region24
    $region23: #{_lambda_.1} parent=5 // pred_region
      // Predicated region
      $region25: #{_lambda_.1} parent=23 // pred_check
        %p128 = pneg %p29
      $region26: #{_lambda_.1} parent=23 // pred_check_branch
        %130 = sbr.rel (%p128) target = $region28
      $region27: #{_lambda_.1} parent=23 // pred_region
        %p131 = scmp.lt.s32.totalorder %s9, 1
        %s132 = scalar_select %p131, %s9, 1
        %s133 = smul.addr %s132, 18
        %s134 = smul.addr %s133, 8
        %s135 = scalar_lea.vmem %s0, %s134
      $region28: #{_lambda_.1} parent=23 // pred_fallthru
        _
    $region24: #{_lambda_.1} parent=5 // pred_fallthru
      _
    %p136 = scmp.le.s32.totalorder 1, %s9
    %p137 = scmp.lt.s32.totalorder %s9, 3
    %p138 = pnand %p136, %p137
    %p139 = pneg %p138
    // Predicated region
    $region29: #{_lambda_.1} parent=5 // pred_check
      _
    $region30: #{_lambda_.1} parent=5 // pred_check_branch
      %141 = sbr.rel (%p138) target = $region32
    $region31: #{_lambda_.1} parent=5 // pred_region
      %s142 = ssub.s32 %s9, 1
      %p143 = scmp.lt.s32.totalorder %s14, 1
      %s144 = scalar_select %p143, %s14, 1
      %s145 = smul.addr %s144, 18
      %s146 = smul.addr %s145, 8
      %s147 = scalar_lea.vmem %s0, %s146
      %p148 = pneg %p35
      %p149 = pneg %p32
      %p150 = pneg %p56
      %p151 = pneg %p53
      %p152 = pneg %p77
      %p153 = pneg %p74
      %p154 = pneg %p103
      %p155 = pneg %p100
      %p156 = scmp.lt.s32.totalorder %s14, 1
      %s157 = scalar_select %p156, %s14, 1
      %s158 = smul.addr %s157, 8
      %s159 = smul.addr %s158, 8
      %s160 = scalar_lea.vmem %s3, %s159
      %p161 = scmp.lt.s32.totalorder %s14, 1
      %s162 = scalar_select %p161, %s14, 1
      %s163 = smul.addr %s162, 18
      %s164 = smul.addr %s163, 8
      %s165 = scalar_lea.vmem %s0, %s164
      %p166 = scmp.lt.s32.totalorder %s14, 1
      %s167 = scalar_select %p166, %s14, 1
      %s168 = smul.addr %s167, 8
      %s169 = smul.addr %s168, 8
      %s170 = scalar_lea.vmem %s3, %s169
      %v172 = vld [vmem:[%s165] sm:$0xff]
      %v173 = vld [vmem:[%s165 + $0x10] sm:$0xff]
      %v174 = vld [vmem:[%s165 + $0x20] sm:$0xff]
      %v175 = vld [vmem:[%s165 + $0x30] sm:$0xff]
      %v176 = vld [vmem:[%s165 + $0x40] sm:$0xff]
      %v177 = vld [vmem:[%s165 + $0x50] sm:$0xff]
      %v178 = vld [vmem:[%s165 + $0x60] sm:$0xff]
      %v179 = vld [vmem:[%s165 + $0x70] sm:$0xff]
      %vm180 = vcmask 130048
      %181 = vst.msk [vmem:[#allocation2] sm:$0xff] %vm180, %v172
      %182 = vst.msk [vmem:[#allocation2 + $0x8] sm:$0xff] %vm180, %v173
      %183 = vst.msk [vmem:[#allocation2 + $0x10] sm:$0xff] %vm180, %v174
      %184 = vst.msk [vmem:[#allocation2 + $0x18] sm:$0xff] %vm180, %v175
      %185 = vst.msk [vmem:[#allocation2 + $0x20] sm:$0xff] %vm180, %v176
      %186 = vst.msk [vmem:[#allocation2 + $0x28] sm:$0xff] %vm180, %v177
      %187 = vst.msk [vmem:[#allocation2 + $0x30] sm:$0xff] %vm180, %v178
      %188 = vst.msk [vmem:[#allocation2 + $0x38] sm:$0xff] %vm180, %v179
      %v189 = vld [vmem:[%s165 + $0x1] sm:$0xff]
      %v190 = vld [vmem:[%s165 + $0x11] sm:$0xff]
      %v191 = vld [vmem:[%s165 + $0x21] sm:$0xff]
      %v192 = vld [vmem:[%s165 + $0x31] sm:$0xff]
      %v193 = vld [vmem:[%s165 + $0x41] sm:$0xff]
      %v194 = vld [vmem:[%s165 + $0x51] sm:$0xff]
      %v195 = vld [vmem:[%s165 + $0x61] sm:$0xff]
      %v196 = vld [vmem:[%s165 + $0x71] sm:$0xff]
      %205 = vrot.lane.b32.xlu0 %v189, 16
      %v206 = vpop.permute.xlu0 %205
      %207 = vrot.lane.b32.xlu0 %v190, 16
      %v208 = vpop.permute.xlu0 %207
      %209 = vrot.lane.b32.xlu0 %v191, 16
      %v210 = vpop.permute.xlu0 %209
      %211 = vrot.lane.b32.xlu0 %v192, 16
      %v212 = vpop.permute.xlu0 %211
      %213 = vrot.lane.b32.xlu0 %v193, 16
      %v214 = vpop.permute.xlu0 %213
      %215 = vrot.lane.b32.xlu0 %v194, 16
      %v216 = vpop.permute.xlu0 %215
      %217 = vrot.lane.b32.xlu0 %v195, 16
      %v218 = vpop.permute.xlu0 %217
      %219 = vrot.lane.b32.xlu0 %v196, 16
      %v220 = vpop.permute.xlu0 %219
      %vm229 = vcmask 261248
      %230 = vst.msk [vmem:[#allocation2] sm:$0xff] %vm229, %v206
      %231 = vst.msk [vmem:[#allocation2 + $0x8] sm:$0xff] %vm229, %v208
      %232 = vst.msk [vmem:[#allocation2 + $0x10] sm:$0xff] %vm229, %v210
      %233 = vst.msk [vmem:[#allocation2 + $0x18] sm:$0xff] %vm229, %v212
      %234 = vst.msk [vmem:[#allocation2 + $0x20] sm:$0xff] %vm229, %v214
      %235 = vst.msk [vmem:[#allocation2 + $0x28] sm:$0xff] %vm229, %v216
      %236 = vst.msk [vmem:[#allocation2 + $0x30] sm:$0xff] %vm229, %v218
      %237 = vst.msk [vmem:[#allocation2 + $0x38] sm:$0xff] %vm229, %v220
      %s238 = scalar_lea.vmem %s165, 16
      %v239 = vld [vmem:[%s238] sm:$0xff]
      %v240 = vld [vmem:[%s238 + $0x10] sm:$0xff]
      %v241 = vld [vmem:[%s238 + $0x20] sm:$0xff]
      %v242 = vld [vmem:[%s238 + $0x30] sm:$0xff]
      %v243 = vld [vmem:[%s238 + $0x40] sm:$0xff]
      %v244 = vld [vmem:[%s238 + $0x50] sm:$0xff]
      %v245 = vld [vmem:[%s238 + $0x60] sm:$0xff]
      %v246 = vld [vmem:[%s238 + $0x70] sm:$0xff]
      %255 = vrot.lane.b32.xlu0 %v239, 32
      %v256 = vpop.permute.xlu0 %255
      %257 = vrot.lane.b32.xlu0 %v240, 32
      %v258 = vpop.permute.xlu0 %257
      %259 = vrot.lane.b32.xlu0 %v241, 32
      %v260 = vpop.permute.xlu0 %259
      %261 = vrot.lane.b32.xlu0 %v242, 32
      %v262 = vpop.permute.xlu0 %261
      %263 = vrot.lane.b32.xlu0 %v243, 32
      %v264 = vpop.permute.xlu0 %263
      %265 = vrot.lane.b32.xlu0 %v244, 32
      %v266 = vpop.permute.xlu0 %265
      %267 = vrot.lane.b32.xlu0 %v245, 32
      %v268 = vpop.permute.xlu0 %267
      %269 = vrot.lane.b32.xlu0 %v246, 32
      %v270 = vpop.permute.xlu0 %269
      %vm279 = vcmask 392448
      %280 = vst.msk [vmem:[#allocation2] sm:$0xff] %vm279, %v256
      %281 = vst.msk [vmem:[#allocation2 + $0x8] sm:$0xff] %vm279, %v258
      %282 = vst.msk [vmem:[#allocation2 + $0x10] sm:$0xff] %vm279, %v260
      %283 = vst.msk [vmem:[#allocation2 + $0x18] sm:$0xff] %vm279, %v262
      %284 = vst.msk [vmem:[#allocation2 + $0x20] sm:$0xff] %vm279, %v264
      %285 = vst.msk [vmem:[#allocation2 + $0x28] sm:$0xff] %vm279, %v266
      %286 = vst.msk [vmem:[#allocation2 + $0x30] sm:$0xff] %vm279, %v268
      %287 = vst.msk [vmem:[#allocation2 + $0x38] sm:$0xff] %vm279, %v270
      %v288 = vld [vmem:[%s238 + $0x1] sm:$0xff]
      %v289 = vld [vmem:[%s238 + $0x11] sm:$0xff]
      %v290 = vld [vmem:[%s238 + $0x21] sm:$0xff]
      %v291 = vld [vmem:[%s238 + $0x31] sm:$0xff]
      %v292 = vld [vmem:[%s238 + $0x41] sm:$0xff]
      %v293 = vld [vmem:[%s238 + $0x51] sm:$0xff]
      %v294 = vld [vmem:[%s238 + $0x61] sm:$0xff]
      %v295 = vld [vmem:[%s238 + $0x71] sm:$0xff]
      %304 = vrot.lane.b32.xlu0 %v288, 48
      %v305 = vpop.permute.xlu0 %304
      %306 = vrot.lane.b32.xlu0 %v289, 48
      %v307 = vpop.permute.xlu0 %306
      %308 = vrot.lane.b32.xlu0 %v290, 48
      %v309 = vpop.permute.xlu0 %308
      %310 = vrot.lane.b32.xlu0 %v291, 48
      %v311 = vpop.permute.xlu0 %310
      %312 = vrot.lane.b32.xlu0 %v292, 48
      %v313 = vpop.permute.xlu0 %312
      %314 = vrot.lane.b32.xlu0 %v293, 48
      %v315 = vpop.permute.xlu0 %314
      %316 = vrot.lane.b32.xlu0 %v294, 48
      %v317 = vpop.permute.xlu0 %316
      %318 = vrot.lane.b32.xlu0 %v295, 48
      %v319 = vpop.permute.xlu0 %318
      %vm328 = vcmask 523648
      %329 = vst.msk [vmem:[#allocation2] sm:$0xff] %vm328, %v305
      %330 = vst.msk [vmem:[#allocation2 + $0x8] sm:$0xff] %vm328, %v307
      %331 = vst.msk [vmem:[#allocation2 + $0x10] sm:$0xff] %vm328, %v309
      %332 = vst.msk [vmem:[#allocation2 + $0x18] sm:$0xff] %vm328, %v311
      %333 = vst.msk [vmem:[#allocation2 + $0x20] sm:$0xff] %vm328, %v313
      %334 = vst.msk [vmem:[#allocation2 + $0x28] sm:$0xff] %vm328, %v315
      %335 = vst.msk [vmem:[#allocation2 + $0x30] sm:$0xff] %vm328, %v317
      %336 = vst.msk [vmem:[#allocation2 + $0x38] sm:$0xff] %vm328, %v319
      %v337 = vld [vmem:[#allocation2] sm:$0xff]
      %v338 = vld [vmem:[#allocation2 + $0x8] sm:$0xff]
      %v339 = vld [vmem:[#allocation2 + $0x10] sm:$0xff]
      %v340 = vld [vmem:[#allocation2 + $0x18] sm:$0xff]
      %v341 = vld [vmem:[#allocation2 + $0x20] sm:$0xff]
      %v342 = vld [vmem:[#allocation2 + $0x28] sm:$0xff]
      %v343 = vld [vmem:[#allocation2 + $0x30] sm:$0xff]
      %v344 = vld [vmem:[#allocation2 + $0x38] sm:$0xff]
      %v345 = vpack.c.bf16 %v338, %v337
      %v346 = vpack.c.bf16 %v340, %v339
      %v347 = vpack.c.bf16 %v342, %v341
      %v348 = vpack.c.bf16 %v344, %v343
      %v349 = vld [vmem:[%s1] sm:$0xff]
      %v350 = vld [vmem:[%s1 + $0x8] sm:$0xff]
      %v351 = vld [vmem:[%s1 + $0x10] sm:$0xff]
      %v352 = vld [vmem:[%s1 + $0x18] sm:$0xff]
      %v353 = vld [vmem:[%s1 + $0x20] sm:$0xff]
      %v354 = vld [vmem:[%s1 + $0x28] sm:$0xff]
      %v355 = vld [vmem:[%s1 + $0x30] sm:$0xff]
      %v356 = vld [vmem:[%s1 + $0x38] sm:$0xff]
      %v357 = vpack.c.bf16 %v350, %v349
      %v358 = vpack.c.bf16 %v352, %v351
      %v359 = vpack.c.bf16 %v354, %v353
      %v360 = vpack.c.bf16 %v356, %v355
      %v361 = vld [vmem:[%s2] sm:$0x1]
      %v363 = vlaneseq
      %v364 = vshrl.u32 %v363, 7
      %v365 = vsub.s32 0, %v364
      %v366 = vrot.slane %v361, %v365
      %vm368 = vcmask 523264
      %v370 = vsel %vm368, %v345, 0
      %v373 = vsel %vm368, %v346, 0
      %v376 = vsel %vm368, %v347, 0
      %v379 = vsel %vm368, %v348, 0
      %381 = vmatprep.subr.bf16.mxu0 0
      %382 = vmatpush1.bf16.msra.mxu0 0
      %383 = vmatprep.subr.bf16.mxu0 0
      %384 = vmatpush1.bf16.msra.mxu0 0
      %385 = vmatprep.subr.bf16.mxu0 0
      %386 = vmatpush1.bf16.msra.mxu0 0
      %387 = vmatprep.subr.bf16.mxu0 0
      %388 = vmatpush1.bf16.msra.mxu0 0
      %389 = vmatprep.subr.bf16.mxu0 0
      %390 = vmatpush1.bf16.msra.mxu0 %v360
      %391 = vmatprep.subr.bf16.mxu0 0
      %392 = vmatpush1.bf16.msra.mxu0 %v359
      %393 = vmatprep.subr.bf16.mxu0 0
      %394 = vmatpush1.bf16.msra.mxu0 %v358
      %395 = vmatprep.subr.bf16.mxu0 0
      %396 = vmatpush1.bf16.msra.mxu0 %v357
      %397 = vmatprep.subr.bf16.mxu0 0
      %398 = vmatpush2.bf16.msra.mxu0 0
      %399 = vmatprep.subr.bf16.mxu0 0
      %400 = vmatpush2.bf16.msra.mxu0 0
      %401 = vmatprep.subr.bf16.mxu0 0
      %402 = vmatpush2.bf16.msra.mxu0 0
      %403 = vmatprep.subr.bf16.mxu0 0
      %404 = vmatpush2.bf16.msra.mxu0 0
      %405 = vmatprep.subr.bf16.mxu0 0
      %406 = vmatpush2.bf16.msra.mxu0 0
      %407 = vmatprep.subr.bf16.mxu0 0
      %408 = vmatpush2.bf16.msra.mxu0 0
      %409 = vmatprep.subr.bf16.mxu0 0
      %410 = vmatpush2.bf16.msra.mxu0 0
      %411 = vmatprep.subr.bf16.mxu0 0
      %412 = vmatpush2.bf16.msra.mxu0 0
      %413 = vmatprep.mubr.bf16.mxu0 0
      %414 = vmatmul.mubr.bf16.gmra.mxu0 %v370
      %v415 = vpop.f32.mrf.mxu0
      %v416 = vadd.f32 %v366, %v415
      %v417 = vpop.f32.mrf.mxu0
      %v418 = vpop.f32.mrf.mxu0
      %v419 = vadd.f32 %v366, %v418
      %v420 = vpop.f32.mrf.mxu0
      %421 = vmatprep.mubr.bf16.mxu0 0
      %422 = vmatmul.mubr.bf16.gmra.mxu0 %v373
      %v423 = vpop.f32.mrf.mxu0
      %v424 = vadd.f32 %v366, %v423
      %v425 = vpop.f32.mrf.mxu0
      %v426 = vpop.f32.mrf.mxu0
      %v427 = vadd.f32 %v366, %v426
      %v428 = vpop.f32.mrf.mxu0
      %429 = vmatprep.mubr.bf16.mxu0 0
      %430 = vmatmul.mubr.bf16.gmra.mxu0 %v376
      %v431 = vpop.f32.mrf.mxu0
      %v432 = vadd.f32 %v366, %v431
      %v433 = vpop.f32.mrf.mxu0
      %v434 = vpop.f32.mrf.mxu0
      %v435 = vadd.f32 %v366, %v434
      %v436 = vpop.f32.mrf.mxu0
      %437 = vmatprep.mubr.bf16.mxu0 0
      %438 = vmatmul.mubr.bf16.gmra.mxu0 %v379
      %v439 = vpop.f32.mrf.mxu0
      %v440 = vadd.f32 %v366, %v439
      %v441 = vpop.f32.mrf.mxu0
      %v442 = vpop.f32.mrf.mxu0
      %v443 = vadd.f32 %v366, %v442
      %v444 = vpop.f32.mrf.mxu0
      %445 = vdwg.mxu0
      %vm446 = vcmp.gt.f32.partialorder %v416, 0.0
      %vm447 = vcmp.gt.f32.partialorder %v419, 0.0
      %vm448 = vcmp.gt.f32.partialorder %v424, 0.0
      %vm449 = vcmp.gt.f32.partialorder %v427, 0.0
      %vm450 = vcmp.gt.f32.partialorder %v432, 0.0
      %vm451 = vcmp.gt.f32.partialorder %v435, 0.0
      %vm452 = vcmp.gt.f32.partialorder %v440, 0.0
      %vm453 = vcmp.gt.f32.partialorder %v443, 0.0
      %v454 = vmul.f32 %v416, 0.2
      %v455 = vmul.f32 %v419, 0.2
      %v456 = vmul.f32 %v424, 0.2
      %v457 = vmul.f32 %v427, 0.2
      %v458 = vmul.f32 %v432, 0.2
      %v459 = vmul.f32 %v435, 0.2
      %v460 = vmul.f32 %v440, 0.2
      %v461 = vmul.f32 %v443, 0.2
      %v462 = vsel %vm446, %v416, %v454
      %v463 = vsel %vm447, %v419, %v455
      %v464 = vsel %vm448, %v424, %v456
      %v465 = vsel %vm449, %v427, %v457
      %v466 = vsel %vm450, %v432, %v458
      %v467 = vsel %vm451, %v435, %v459
      %v468 = vsel %vm452, %v440, %v460
      %v469 = vsel %vm453, %v443, %v461
      %vm470 = vcmask 64512
      %471 = vst.msk [vmem:[%s170] sm:$0xff] %vm470, %v462
      %472 = vst.msk [vmem:[%s170 + $0x8] sm:$0xff] %vm470, %v463
      %473 = vst.msk [vmem:[%s170 + $0x10] sm:$0xff] %vm470, %v464
      %474 = vst.msk [vmem:[%s170 + $0x18] sm:$0xff] %vm470, %v465
      %475 = vst.msk [vmem:[%s170 + $0x20] sm:$0xff] %vm470, %v466
      %476 = vst.msk [vmem:[%s170 + $0x28] sm:$0xff] %vm470, %v467
      %477 = vst.msk [vmem:[%s170 + $0x30] sm:$0xff] %vm470, %v468
      %478 = vst.msk [vmem:[%s170 + $0x38] sm:$0xff] %vm470, %v469
      %p479 = scmp.lt.s32.totalorder %s14, 1
      %s480 = scalar_select %p479, %s14, 1
      %s481 = smul.addr %s480, 8
      %s482 = smul.addr %s481, 8
      %s483 = scalar_lea.vmem %s3, %s482
      // Predicated region
      $region33: #{_lambda_.1} parent=31 // pred_check
        %p484 = pneg %p100
      $region34: #{_lambda_.1} parent=31 // pred_check_branch
        %486 = sbr.rel (%p484) target = $region36
      $region35: #{_lambda_.1} parent=31 // pred_region
        _
      $region36: #{_lambda_.1} parent=31 // pred_fallthru
        _
    $region32: #{_lambda_.1} parent=5 // pred_fallthru
      _
    %p487 = scmp.le.s32.totalorder 2, %s9
    // Predicated region
    $region37: #{_lambda_.1} parent=5 // pred_check
      %p488 = pneg %p487
    $region38: #{_lambda_.1} parent=5 // pred_check_branch
      %490 = sbr.rel (%p488) target = $region40
    $region39: #{_lambda_.1} parent=5 // pred_region
      %s491 = ssub.s32 %s9, 2
      // Predicated region
      $region41: #{_lambda_.1} parent=39 // pred_check
        %p492 = pneg %p106
      $region42: #{_lambda_.1} parent=39 // pred_check_branch
        %494 = sbr.rel (%p492) target = $region44
      $region43: #{_lambda_.1} parent=39 // pred_region
        %p495 = scmp.lt.s32.totalorder %s15, 1
        %s496 = scalar_select %p495, %s15, 1
        %s497 = smul.addr %s496, 8
        %s498 = smul.addr %s497, 8
        %s499 = scalar_lea.vmem %s3, %s498
      $region44: #{_lambda_.1} parent=39 // pred_fallthru
        _
    $region40: #{_lambda_.1} parent=5 // pred_fallthru
      _
  $region6: #{_lambda_.1} parent=0 // loop_footer
    %s13 = sadd.s32 1, %s9
  $region7: #{_lambda_.1} parent=0 // loop_footer_branch
    %8 = sbr.rel target = $region3
  $region8: #{_lambda_.1} parent=0 // loop_exit
    _

</llo_original>
